<compile_context>
chip_gen: v6e
topology: v6e:2x2x1
jax: 0.10.0
libtpu: 0.0.40
codegen_flags: <defaults>
</compile_context>

<pallas_src>
import jax
import jax.numpy as jnp
from jax import lax
from jax.experimental import pallas as pl
from jax.experimental.pallas import tpu as pltpu

_LN_EPS = 1e-12          # XLNet config.layer_norm_eps
_MASK_NEG = 1e30         # fp32 additive masking constant (stays f32 even w/ bf16 matmuls)
_INF = 1e30              # stand-in for the module-level INF constant
_VMEM_LIMIT = 48 * 1024 * 1024   # leaves double-buffer headroom under v7x's 64 MiB


def _erf(x):
    # Abramowitz & Stegun 7.1.26 polynomial erf (max abs err ~1.5e-7, i.e. f32-level),
    # built only from exp / mul / add so it lowers cleanly on Mosaic.
    a1, a2, a3, a4, a5, p = (0.254829592, -0.284496736, 1.421413741,
                             -1.453152027, 1.061405429, 0.3275911)
    sign = jnp.where(x >= 0.0, 1.0, -1.0)
    z = jnp.abs(x)
    t = 1.0 / (1.0 + p * z)
    poly = t * (a1 + t * (a2 + t * (a3 + t * (a4 + t * a5))))
    return sign * (1.0 - poly * jnp.exp(-z * z))


def _gelu(x):
    # exact (erf-based) GELU, matching transformers' default XLNet ff_activation="gelu"
    return 0.5 * x * (1.0 + _erf(x * 0.7071067811865476))


def _layer_norm(x, g, b):
    mu = jnp.mean(x, axis=-1, keepdims=True)
    xc = x - mu
    var = jnp.mean(xc * xc, axis=-1, keepdims=True)
    return xc * lax.rsqrt(var + _LN_EPS) * g + b


# --------------------------------------------------------------------------------------
# Kernel 1: embedding combine (stance/disco softmax + matmul + mask fill), grid over B
# --------------------------------------------------------------------------------------
def _emb_combine_kernel(st_t_ref, di_t_ref, we_ref, sl_ref, dl_ref,
                        sw2_ref, dw2_ref, rst_ref, rdi_ref, keep_ref, out_ref):
    we = we_ref[0]                                  # (S, D)
    inv_st = 1.0 / st_t_ref[0, 0]
    inv_di = 1.0 / di_t_ref[0, 0]

    # stance branch: softmax(stance_logit / stance_t) @ stance_w2
    sl = sl_ref[0] * inv_st
    sl = sl - jnp.max(sl, axis=-1, keepdims=True)
    sw = jnp.exp(sl)
    sw = sw * pl.reciprocal(jnp.sum(sw, axis=-1, keepdims=True), approx=True)
    se2 = jnp.dot(sw, sw2_ref[...], preferred_element_type=jnp.float32)     # (S, D)

    # disco branch: softmax(disco_logit / disco_t) @ disco_w2
    dl = dl_ref[0] * inv_di
    dl = dl - jnp.max(dl, axis=-1, keepdims=True)
    dw = jnp.exp(dl)
    dw = dw * pl.reciprocal(jnp.sum(dw, axis=-1, keepdims=True), approx=True)
    de2 = jnp.dot(dw, dw2_ref[...], preferred_element_type=jnp.float32)     # (S, D)

    hidden = we + rst_ref[...] + se2 + rdi_ref[...] + de2
    out_ref[0] = hidden * keep_ref[0]               # masked_fill_(mask == 0, 0.0)


def emb_combine(word_emb, st_logit, di_logit, st_t, di_t,
                st_w2, di_w2, ref_st, ref_di, keep):
    B, S, D = word_emb.shape
    Ns = st_logit.shape[-1]
    Nd = di_logit.shape[-1]
    smem = pl.BlockSpec(memory_space=pltpu.MemorySpace.SMEM)
    bmap = lambda b: (b, 0, 0)
    cmap = lambda b: (0, 0)
    in_specs = [
        smem, smem,
        pl.BlockSpec((1, S, D), bmap),
        pl.BlockSpec((1, S, Ns), bmap),
        pl.BlockSpec((1, S, Nd), bmap),
        pl.BlockSpec((Ns, D), cmap),
        pl.BlockSpec((Nd, D), cmap),
        pl.BlockSpec((1, D), cmap),
        pl.BlockSpec((1, D), cmap),
        pl.BlockSpec((1, S, 1), bmap),
    ]
    return pl.pallas_call(
        _emb_combine_kernel,
        out_shape=jax.ShapeDtypeStruct((B, S, D), jnp.float32),
        grid=(B,),
        in_specs=in_specs,
        out_specs=pl.BlockSpec((1, S, D), bmap),
        compiler_params=pltpu.CompilerParams(dimension_semantics=("parallel",)),
    )(st_t, di_t, word_emb, st_logit, di_logit, st_w2, di_w2, ref_st, ref_di, keep)


# --------------------------------------------------------------------------------------
# Kernel 2: one XLNet relative-attention layer + feed-forward, grid over (B, q-blocks)
# --------------------------------------------------------------------------------------
def _xlnet_layer_kernel(hq_ref, hkv_ref, r_ref, maskk_ref, keepq_ref,
                        typek_ref, typeq_ref,
                        wq_ref, wkv_ref, wr_ref, wo_ref,
                        rwb_ref, rrb_ref, rsb_ref, se0_ref, se1_ref,
                        ln1g_ref, ln1b_ref, w1_ref, b1_ref, w2_ref, b2_ref,
                        ln2g_ref, ln2b_ref, out_ref):
    TQ, D = hq_ref.shape[1], hq_ref.shape[2]
    K = hkv_ref.shape[1]                 # klen (= S, mems=None)
    H, Dh = se0_ref.shape
    HDh = H * Dh
    W = K + TQ
    scale = 1.0 / (Dh ** 0.5)
    bf16, f32 = jnp.bfloat16, jnp.float32

    qi = pl.program_id(1)
    i0 = qi * TQ

    hq = hq_ref[0]                                   # (TQ, D) f32 (residual path)
    hq_b = hq.astype(bf16)
    hkv_b = hkv_ref[0].astype(bf16)                  # (K, D)

    # ---- fused, lane-dense projections (MXU, bf16 in / f32 accumulate) ----
    q = jnp.dot(hq_b, wq_ref[...], preferred_element_type=f32)        # (TQ, HDh)
    kv = jnp.dot(hkv_b, wkv_ref[...], preferred_element_type=f32)     # (K, 2*HDh)
    kv_b = kv.astype(bf16)

    # positional projection only on the klen+TQ rows this q-block can reference
    delta = pl.multiple_of(K - (qi + 1) * TQ, TQ)
    r_blk = r_ref[pl.ds(delta, W), :]                                  # (W, D) bf16
    kr = jnp.dot(r_blk, wr_ref[...], preferred_element_type=f32)       # (W, HDh)
    kr_b = kr.astype(bf16)

    # fold the 1/sqrt(d_head) scale into the (query + bias) terms (feedback #6)
    qw_b = ((q + rwb_ref[...]) * scale).astype(bf16)                   # content
    qr_b = ((q + rrb_ref[...]) * scale).astype(bf16)                   # position
    qs = (q + rsb_ref[...]) * scale                                    # segment (f32 VPU)

    # ---- masks / segments derived in-kernel from O(S) data (feedback #9) ----
    mk = maskk_ref[0]                                                  # (1, K) f32, 1=valid
    row_g = lax.broadcasted_iota(jnp.int32, (TQ, K), 0) + i0
    col_g = lax.broadcasted_iota(jnp.int32, (TQ, K), 1)
    eye = (row_g == col_g).astype(f32)
    blocked = (((1.0 - mk) - eye) > 0.0).astype(f32)                   # non_tgt_mask
    seg_diff = (typeq_ref[0] != typek_ref[0]).astype(f32)              # (TQ, K)

    # per-row relative shift: out[i, j] = x[i, TQ - i + j]   (XLNet rel_shift_bnij)
    # implemented as one static left-roll + log2(TQ) conditional right-rolls
    row_col = lax.broadcasted_iota(jnp.int32, (TQ, 1), 0)
    nbits = (TQ - 1).bit_length()

    def rel_shift(x):                                                  # (TQ, W) -> (TQ, K)
        y = jnp.roll(x, -TQ, axis=-1)
        for b in range(nbits):
            bit = (row_col >> b) & 1
            y = jnp.where(bit == 1, jnp.roll(y, 1 << b, axis=-1), y)
        return y[:, :K]

    dimnums = (((1,), (1,)), ((), ()))     # contract last dims: A @ B^T

    pieces = []
    for h in range(H):                     # static per-head loop (scores are per-head)
        sl = slice(h * Dh, (h + 1) * Dh)
        k_h = kv_b[:, sl]                                           # (K, Dh)
        v_h = kv_b[:, HDh + h * Dh: HDh + (h + 1) * Dh]             # (K, Dh)
        kr_h = kr_b[:, sl]                                          # (W, Dh)

        ac = lax.dot_general(qw_b[:, sl], k_h, dimnums,
                             preferred_element_type=f32)            # (TQ, K)
        bdf = lax.dot_general(qr_b[:, sl], kr_h, dimnums,
                              preferred_element_type=f32)           # (TQ, W)
        bd = rel_shift(bdf)                                         # (TQ, K)

        qs_h = qs[:, sl]
        ef0 = jnp.sum(qs_h * se0_ref[h:h + 1, :], axis=-1, keepdims=True)   # (TQ, 1)
        ef1 = jnp.sum(qs_h * se1_ref[h:h + 1, :], axis=-1, keepdims=True)
        ef = ef0 + seg_diff * (ef1 - ef0)                           # (TQ, K)

        score = ac + bd + ef - _MASK_NEG * blocked                  # f32 masking
        score = score - jnp.max(score, axis=-1, keepdims=True)
        p = jnp.exp(score)
        prob = p * pl.reciprocal(jnp.sum(p, axis=-1, keepdims=True), approx=True)

        pieces.append(jnp.dot(prob.astype(bf16), v_h,
                              preferred_element_type=f32))          # (TQ, Dh)

    attn_flat = jnp.concatenate(pieces, axis=-1)                    # (TQ, HDh) f32
    attn_out = jnp.dot(attn_flat.astype(bf16), wo_ref[...],
                       preferred_element_type=f32)                  # (TQ, D)

    # post_attention: residual + LayerNorm
    x1 = _layer_norm(attn_out + hq, ln1g_ref[...], ln1b_ref[...])
    # feed-forward: Linear -> GELU -> Linear -> residual + LayerNorm
    ff = jnp.dot(x1.astype(bf16), w1_ref[...], preferred_element_type=f32) + b1_ref[...]
    ff = _gelu(ff)
    ff = jnp.dot(ff.astype(bf16), w2_ref[...], preferred_element_type=f32) + b2_ref[...]
    y = _layer_norm(ff + x1, ln2g_ref[...], ln2b_ref[...])

    out_ref[0] = y * keepq_ref[0]                    # masked_fill_(mask == 0, 0.0)


def xlnet_layer(hidden, pos_emb, mask_keys, keep, type_keys, type_cols, lp, *, tq):
    B, S, D = hidden.shape
    R = pos_emb.shape[0]
    n_q = S // tq
    HDh = lp['wq'].shape[1]
    H, Dh = lp['se0'].shape
    Dinner = lp['w1'].shape[1]

    qmap3 = lambda b, i: (b, i, 0)
    kvmap3 = lambda b, i: (b, 0, 0)
    cmap2 = lambda b, i: (0, 0)

    in_specs = [
        pl.BlockSpec((1, tq, D), qmap3),          # hidden: query rows (+ residual)
        pl.BlockSpec((1, S, D), kvmap3),          # hidden: keys/values (full, mems=None)
        pl.BlockSpec((R, D), cmap2),              # relative positional encodings (bf16)
        pl.BlockSpec((1, 1, S), kvmap3),          # mask over keys (B,1,S)
        pl.BlockSpec((1, tq, 1), qmap3),          # keep mask for query rows (B,S,1)
        pl.BlockSpec((1, 1, S), kvmap3),          # type ids, key side (B,1,S)
        pl.BlockSpec((1, tq, 1), qmap3),          # type ids, query side (B,S,1)
        pl.BlockSpec((D, HDh), cmap2),            # fused Wq (bf16)
        pl.BlockSpec((D, 2 * HDh), cmap2),        # fused Wk|Wv (bf16)
        pl.BlockSpec((D, HDh), cmap2),            # fused Wr (bf16)
        pl.BlockSpec((HDh, D), cmap2),            # fused Wo (bf16)
        pl.BlockSpec((1, HDh), cmap2),            # r_w_bias
        pl.BlockSpec((1, HDh), cmap2),            # r_r_bias
        pl.BlockSpec((1, HDh), cmap2),            # r_s_bias
        pl.BlockSpec((H, Dh), cmap2),             # seg_embed[0]
        pl.BlockSpec((H, Dh), cmap2),             # seg_embed[1]
        pl.BlockSpec((1, D), cmap2),              # ln1 gamma
        pl.BlockSpec((1, D), cmap2),              # ln1 beta
        pl.BlockSpec((D, Dinner), cmap2),         # ffn w1 (bf16)
        pl.BlockSpec((1, Dinner), cmap2),         # ffn b1
        pl.BlockSpec((Dinner, D), cmap2),         # ffn w2 (bf16)
        pl.BlockSpec((1, D), cmap2),              # ffn b2
        pl.BlockSpec((1, D), cmap2),              # ln2 gamma
        pl.BlockSpec((1, D), cmap2),              # ln2 beta
    ]
    return pl.pallas_call(
        _xlnet_layer_kernel,
        out_shape=jax.ShapeDtypeStruct((B, S, D), jnp.float32),
        grid=(B, n_q),
        in_specs=in_specs,
        out_specs=pl.BlockSpec((1, tq, D), qmap3),
        compiler_params=pltpu.CompilerParams(
            dimension_semantics=("parallel", "parallel"),
            vmem_limit_bytes=_VMEM_LIMIT),
    )(hidden, hidden, pos_emb, mask_keys, keep, type_keys, type_cols,
      lp['wq'], lp['wkv'], lp['wr'], lp['wo'],
      lp['rwb'], lp['rrb'], lp['rsb'], lp['se0'], lp['se1'],
      lp['ln1g'], lp['ln1b'], lp['w1'], lp['b1'], lp['w2'], lp['b2'],
      lp['ln2g'], lp['ln2b'])


# --------------------------------------------------------------------------------------
# Glue (plain JAX): embedding gather, positional encodings, parameter setup
# --------------------------------------------------------------------------------------
def relative_positional_encoding(qlen, klen, d_model):
    freq_seq = jnp.arange(0, d_model, 2.0, dtype=jnp.float32)
    inv_freq = 1.0 / (10000.0 ** (freq_seq / d_model))
    pos_seq = jnp.arange(klen, -qlen, -1.0, dtype=jnp.float32)   # length klen + qlen
    sinusoid = pos_seq[:, None] * inv_freq[None, :]
    return jnp.concatenate([jnp.sin(sinusoid), jnp.cos(sinusoid)], axis=-1)  # (R, D)


def _pick_q_tile(S):
    if S <= 128:
        return S
    for t in (128, 64, 32, 16, 8):
        if S % t == 0:
            return t
    return S
    # TODO(synk): for S not a multiple of 128, pad the key axis to a lane multiple.


def xlnet_encoder_forward(params, x, mask=None, type_ids=None,
                          stance_logit=None, disco_logit=None):
    B, S = x.shape
    D = params['word_emb'].shape[1]
    Ns = params['stance_w2'].shape[0]
    Nd = params['disco_w2'].shape[0]

    if mask is None:
        mask = jnp.ones((B, S), jnp.float32)
    mask = mask.astype(jnp.float32)
    if type_ids is None:
        type_ids = jnp.zeros((B, S), jnp.int32)
    type_ids = type_ids.astype(jnp.int32)
    if stance_logit is None:
        stance_logit = jnp.broadcast_to(jnp.zeros((Ns,), jnp.float32).at[0].set(_INF),
                                        (B, S, Ns))
    if disco_logit is None:
        disco_logit = jnp.broadcast_to(jnp.zeros((Nd,), jnp.float32).at[0].set(_INF),
                                       (B, S, Nd))

    word_emb = params['word_emb'][x]                               # (B,S,D) gather (XLA)
    keep = (mask != 0).astype(jnp.float32).reshape(B, S, 1)

    # refine_emb: sent_ids defaults to zeros -> single-sentence path -> dummy row
    # (= stance_w1[0]/disco_w1[0], zeroed at init).
    # TODO(synk): general multi-sentence refine_emb needs split_ids (undefined in the
    #             reference); only the default sent_ids=None path is implemented.
    ref_st = params['stance_w1'][0].reshape(1, D)
    ref_di = params['disco_w1'][0].reshape(1, D)

    hidden = emb_combine(word_emb.astype(jnp.float32),
                         stance_logit.astype(jnp.float32),
                         disco_logit.astype(jnp.float32),
                         params['stance_t'], params['disco_t'],
                         params['stance_w2'], params['disco_w2'],
                         ref_st, ref_di, keep)

    # attention-side constants (mems=None path: klen == qlen == S)
    pos_emb = relative_positional_encoding(S, S, D).astype(jnp.bfloat16)   # (2S, D)
    mask_keys = mask.reshape(B, 1, S)
    type_keys = type_ids.reshape(B, 1, S)
    type_cols = type_ids.reshape(B, S, 1)
    tq = _pick_q_tile(S)

    new_mems = []
    for lp in params['layers']:
        new_mems.append(hidden)        # cache_mem (mem_len >= S, prev_mem = None)
        hidden = xlnet_layer(hidden, pos_emb, mask_keys, keep, type_keys, type_cols,
                             lp, tq=tq)

    output = hidden                    # dropout = identity; already (B, S, D)
    return output, tuple(new_mems)


def init_params(key, *, vocab, D, H, Dh, Dinner, n_layer, Ns, Nd):
    keys = jax.random.split(key, 8 + 16 * n_layer)
    ki = iter(keys)
    bf16 = jnp.bfloat16

    def nrm(shape, std=0.02):
        return std * jax.random.normal(next(ki), shape, jnp.float32)

    params = {
        'word_emb': nrm((vocab, D)),
        'stance_t': jnp.ones((1, 1), jnp.float32),
        'disco_t': jnp.ones((1, 1), jnp.float32),
        'stance_w1': nrm((Ns, D), 0.01).at[0].set(0.0),
        'stance_w2': nrm((Ns, D), 0.01).at[0].set(0.0),
        'disco_w1': nrm((Nd, D), 0.01).at[0].set(0.0),
        'disco_w2': nrm((Nd, D), 0.01).at[0].set(0.0),
        'layers': [],
    }
    for _ in range(n_layer):
        q, k, v, r, o = (nrm((D, H, Dh)) for _ in range(5))     # torch layout (D, H, Dh)
        seg_embed = nrm((2, H, Dh))
        lp = {
            # fused head projections, pre-cast to bf16 (native MXU dtype)
            'wq': q.reshape(D, H * Dh).astype(bf16),
            'wkv': jnp.concatenate([k.reshape(D, H * Dh), v.reshape(D, H * Dh)],
                                   axis=1).astype(bf16),
            'wr': r.reshape(D, H * Dh).astype(bf16),
            'wo': jnp.transpose(o, (1, 2, 0)).reshape(H * Dh, D).astype(bf16),
            'rwb': nrm((H, Dh)).reshape(1, H * Dh),
            'rrb': nrm((H, Dh)).reshape(1, H * Dh),
            'rsb': nrm((H, Dh)).reshape(1, H * Dh),
            'se0': seg_embed[0],                    # (H, Dh) f32
            'se1': seg_embed[1],
            'ln1g': jnp.ones((1, D), jnp.float32),
            'ln1b': jnp.zeros((1, D), jnp.float32),
            'w1': nrm((Dinner, D)).T.astype(bf16),  # torch Linear(d_model, d_inner).weight.T
            'b1': nrm((1, Dinner)),
            'w2': nrm((D, Dinner)).T.astype(bf16),
            'b2': nrm((1, D)),
            'ln2g': jnp.ones((1, D), jnp.float32),
            'ln2b': jnp.zeros((1, D), jnp.float32),
        }
        params['layers'].append(lp)
    return params


if __name__ == "__main__":
    # small synthetic config (xlnet-base shrunk): d_model=32, n_head=2, d_head=16,
    # d_inner=64, n_layer=2, vocab=50, num_stances=4, num_discos=6
    B, S, D, H, Dh, Dinner, nL, V, Ns, Nd = 2, 8, 32, 2, 16, 64, 2, 50, 4, 6

    key = jax.random.PRNGKey(0)
    pkey, xkey, skey, dkey = jax.random.split(key, 4)

    params = init_params(pkey, vocab=V, D=D, H=H, Dh=Dh, Dinner=Dinner,
                         n_layer=nL, Ns=Ns, Nd=Nd)

    x = jax.random.randint(xkey, (B, S), 0, V, dtype=jnp.int32)
    mask = jnp.ones((B, S), jnp.float32)
    stance_logit = jax.random.normal(skey, (B, S, Ns), jnp.float32)
    disco_logit = jax.random.normal(dkey, (B, S, Nd), jnp.float32)

    out, new_mems = xlnet_encoder_forward(params, x, mask=mask,
                                          stance_logit=stance_logit,
                                          disco_logit=disco_logit)
    jax.block_until_ready(out)
    assert out.shape == (B, S, D)
    assert len(new_mems) == nL and all(m.shape == (B, S, D) for m in new_mems)
    assert bool(jnp.all(jnp.isfinite(out)))
    print("KERNEL_OK")
</pallas_src>

<mosaic_0001>
module attributes {stable_mosaic.version = 11 : i64} {
  func.func @_emb_combine_kernel(%arg0: i32, %arg1: memref<1x1xf32, #tpu.memory_space<smem>>, %arg2: memref<1x1xf32, #tpu.memory_space<smem>>, %arg3: memref<1x8x32xf32, #tpu.memory_space<vmem>>, %arg4: memref<1x8x4xf32, #tpu.memory_space<vmem>>, %arg5: memref<1x8x6xf32, #tpu.memory_space<vmem>>, %arg6: memref<4x32xf32, #tpu.memory_space<vmem>>, %arg7: memref<6x32xf32, #tpu.memory_space<vmem>>, %arg8: memref<1x32xf32, #tpu.memory_space<vmem>>, %arg9: memref<1x32xf32, #tpu.memory_space<vmem>>, %arg10: memref<1x8x1xf32, #tpu.memory_space<vmem>>, %arg11: memref<1x8x32xf32, #tpu.memory_space<vmem>>) attributes {dimension_semantics = [#tpu.dimension_semantics<parallel>], iteration_bounds = array<i64: 2>, scalar_prefetch = 0 : i64, scratch_operands = 0 : i64, tpu.core_type = #tpu.core_type<tc>, window_params = [{transform_indices = @transform_0, window_bounds = array<i64: 1, 1>}, {transform_indices = @transform_1, window_bounds = array<i64: 1, 1>}, {transform_indices = @transform_2, window_bounds = array<i64: 1, 8, 32>}, {transform_indices = @transform_3, window_bounds = array<i64: 1, 8, 4>}, {transform_indices = @transform_4, window_bounds = array<i64: 1, 8, 6>}, {pipeline_mode = #tpu.pipeline_mode<synchronous>, transform_indices = @transform_5, window_bounds = array<i64: 4, 32>}, {pipeline_mode = #tpu.pipeline_mode<synchronous>, transform_indices = @transform_6, window_bounds = array<i64: 6, 32>}, {pipeline_mode = #tpu.pipeline_mode<synchronous>, transform_indices = @transform_7, window_bounds = array<i64: 1, 32>}, {pipeline_mode = #tpu.pipeline_mode<synchronous>, transform_indices = @transform_8, window_bounds = array<i64: 1, 32>}, {transform_indices = @transform_9, window_bounds = array<i64: 1, 8, 1>}, {transform_indices = @transform_10, window_bounds = array<i64: 1, 8, 32>}]} {
    %c0 = arith.constant 0 : index
    %c0_0 = arith.constant 0 : index
    %c0_1 = arith.constant 0 : index
    %0 = vector.load %arg3[%c0, %c0_0, %c0_1] : memref<1x8x32xf32, #tpu.memory_space<vmem>>, vector<1x8x32xf32>
    %1 = vector.shape_cast %0 : vector<1x8x32xf32> to vector<8x32xf32>
    %c0_2 = arith.constant 0 : index
    %c0_3 = arith.constant 0 : index
    %2 = memref.load %arg1[%c0_2, %c0_3] : memref<1x1xf32, #tpu.memory_space<smem>>
    %cst = arith.constant 1.000000e+00 : f32
    %3 = arith.divf %cst, %2 : f32
    %c0_4 = arith.constant 0 : index
    %c0_5 = arith.constant 0 : index
    %4 = memref.load %arg2[%c0_4, %c0_5] : memref<1x1xf32, #tpu.memory_space<smem>>
    %cst_6 = arith.constant 1.000000e+00 : f32
    %5 = arith.divf %cst_6, %4 : f32
    %c0_7 = arith.constant 0 : index
    %c0_8 = arith.constant 0 : index
    %c0_9 = arith.constant 0 : index
    %6 = vector.load %arg4[%c0_7, %c0_8, %c0_9] : memref<1x8x4xf32, #tpu.memory_space<vmem>>, vector<1x8x4xf32>
    %7 = vector.shape_cast %6 : vector<1x8x4xf32> to vector<8x4xf32>
    %8 = vector.broadcast %3 : f32 to vector<8x4xf32>
    %9 = arith.mulf %7, %8 : vector<8x4xf32>
    %cst_10 = arith.constant dense<0xFF800000> : vector<8xf32>
    %10 = vector.multi_reduction <maximumf>, %9, %cst_10 [1] : vector<8x4xf32> to vector<8xf32>
    %11 = vector.shape_cast %10 : vector<8xf32> to vector<8x1xf32>
    %12 = vector.broadcast %11 : vector<8x1xf32> to vector<8x4xf32>
    %13 = arith.subf %9, %12 : vector<8x4xf32>
    %14 = math.exp %13 : vector<8x4xf32>
    %cst_11 = arith.constant dense<0.000000e+00> : vector<8xf32>
    %15 = vector.multi_reduction <add>, %14, %cst_11 [1] : vector<8x4xf32> to vector<8xf32>
    %16 = vector.shape_cast %15 : vector<8xf32> to vector<8x1xf32>
    %17 = tpu.reciprocal %16 {approx = true} : vector<8x1xf32> -> vector<8x1xf32>
    %18 = vector.broadcast %17 : vector<8x1xf32> to vector<8x4xf32>
    %19 = arith.mulf %14, %18 : vector<8x4xf32>
    %c0_12 = arith.constant 0 : index
    %c0_13 = arith.constant 0 : index
    %20 = vector.load %arg6[%c0_12, %c0_13] : memref<4x32xf32, #tpu.memory_space<vmem>>, vector<4x32xf32>
    %cst_14 = arith.constant dense<0.000000e+00> : vector<8x32xf32>
    %21 = tpu.matmul %19, %20, %cst_14 {dimension_numbers = #tpu.dot_dimension_numbers<[1], [0], [0], [1], [0, 0, 1, 1], [], []>} : vector<8x4xf32>, vector<4x32xf32>, vector<8x32xf32> -> vector<8x32xf32>
    %c0_15 = arith.constant 0 : index
    %c0_16 = arith.constant 0 : index
    %c0_17 = arith.constant 0 : index
    %22 = vector.load %arg5[%c0_15, %c0_16, %c0_17] : memref<1x8x6xf32, #tpu.memory_space<vmem>>, vector<1x8x6xf32>
    %23 = vector.shape_cast %22 : vector<1x8x6xf32> to vector<8x6xf32>
    %24 = vector.broadcast %5 : f32 to vector<8x6xf32>
    %25 = arith.mulf %23, %24 : vector<8x6xf32>
    %cst_18 = arith.constant dense<0xFF800000> : vector<8xf32>
    %26 = vector.multi_reduction <maximumf>, %25, %cst_18 [1] : vector<8x6xf32> to vector<8xf32>
    %27 = vector.shape_cast %26 : vector<8xf32> to vector<8x1xf32>
    %28 = vector.broadcast %27 : vector<8x1xf32> to vector<8x6xf32>
    %29 = arith.subf %25, %28 : vector<8x6xf32>
    %30 = math.exp %29 : vector<8x6xf32>
    %cst_19 = arith.constant dense<0.000000e+00> : vector<8xf32>
    %31 = vector.multi_reduction <add>, %30, %cst_19 [1] : vector<8x6xf32> to vector<8xf32>
    %32 = vector.shape_cast %31 : vector<8xf32> to vector<8x1xf32>
    %33 = tpu.reciprocal %32 {approx = true} : vector<8x1xf32> -> vector<8x1xf32>
    %34 = vector.broadcast %33 : vector<8x1xf32> to vector<8x6xf32>
    %35 = arith.mulf %30, %34 : vector<8x6xf32>
    %c0_20 = arith.constant 0 : index
    %c0_21 = arith.constant 0 : index
    %36 = vector.load %arg7[%c0_20, %c0_21] : memref<6x32xf32, #tpu.memory_space<vmem>>, vector<6x32xf32>
    %cst_22 = arith.constant dense<0.000000e+00> : vector<8x32xf32>
    %37 = tpu.matmul %35, %36, %cst_22 {dimension_numbers = #tpu.dot_dimension_numbers<[1], [0], [0], [1], [0, 0, 1, 1], [], []>} : vector<8x6xf32>, vector<6x32xf32>, vector<8x32xf32> -> vector<8x32xf32>
    %c0_23 = arith.constant 0 : index
    %c0_24 = arith.constant 0 : index
    %38 = vector.load %arg8[%c0_23, %c0_24] : memref<1x32xf32, #tpu.memory_space<vmem>>, vector<1x32xf32>
    %39 = vector.broadcast %38 : vector<1x32xf32> to vector<8x32xf32>
    %40 = arith.addf %1, %39 : vector<8x32xf32>
    %41 = arith.addf %40, %21 : vector<8x32xf32>
    %c0_25 = arith.constant 0 : index
    %c0_26 = arith.constant 0 : index
    %42 = vector.load %arg9[%c0_25, %c0_26] : memref<1x32xf32, #tpu.memory_space<vmem>>, vector<1x32xf32>
    %43 = vector.broadcast %42 : vector<1x32xf32> to vector<8x32xf32>
    %44 = arith.addf %41, %43 : vector<8x32xf32>
    %45 = arith.addf %44, %37 : vector<8x32xf32>
    %c0_27 = arith.constant 0 : index
    %c0_28 = arith.constant 0 : index
    %c0_29 = arith.constant 0 : index
    %46 = vector.load %arg10[%c0_27, %c0_28, %c0_29] : memref<1x8x1xf32, #tpu.memory_space<vmem>>, vector<1x8x1xf32>
    %47 = vector.shape_cast %46 : vector<1x8x1xf32> to vector<8x1xf32>
    %48 = vector.broadcast %47 : vector<8x1xf32> to vector<8x32xf32>
    %49 = arith.mulf %45, %48 : vector<8x32xf32>
    %c0_30 = arith.constant 0 : index
    %c0_31 = arith.constant 0 : index
    %c0_32 = arith.constant 0 : index
    %50 = vector.load %arg11[%c0_30, %c0_31, %c0_32] : memref<1x8x32xf32, #tpu.memory_space<vmem>>, vector<1x8x32xf32>
    %51 = vector.shape_cast %50 : vector<1x8x32xf32> to vector<8x32xf32>
    %52 = vector.shape_cast %49 : vector<8x32xf32> to vector<1x8x32xf32>
    tpu.vector_store %arg11[%c0_30, %c0_31, %c0_32], %52 {strides = array<i32>} : memref<1x8x32xf32, #tpu.memory_space<vmem>>, vector<1x8x32xf32>,
    return
  }
  func.func @transform_0(%arg0: i32) -> (i32, i32) {
    %c0_i32 = arith.constant 0 : i32
    %c0_i32_0 = arith.constant 0 : i32
    %c0_i32_1 = arith.constant 0 : i32
    return %c0_i32, %c0_i32_0 : i32, i32
  }
  func.func @transform_1(%arg0: i32) -> (i32, i32) {
    %c0_i32 = arith.constant 0 : i32
    %c0_i32_0 = arith.constant 0 : i32
    %c0_i32_1 = arith.constant 0 : i32
    return %c0_i32, %c0_i32_0 : i32, i32
  }
  func.func @transform_2(%arg0: i32) -> (i32, i32, i32) {
    %c0_i32 = arith.constant 0 : i32
    %c0_i32_0 = arith.constant 0 : i32
    %c0_i32_1 = arith.constant 0 : i32
    return %arg0, %c0_i32, %c0_i32_0 : i32, i32, i32
  }
  func.func @transform_3(%arg0: i32) -> (i32, i32, i32) {
    %c0_i32 = arith.constant 0 : i32
    %c0_i32_0 = arith.constant 0 : i32
    %c0_i32_1 = arith.constant 0 : i32
    return %arg0, %c0_i32, %c0_i32_0 : i32, i32, i32
  }
  func.func @transform_4(%arg0: i32) -> (i32, i32, i32) {
    %c0_i32 = arith.constant 0 : i32
    %c0_i32_0 = arith.constant 0 : i32
    %c0_i32_1 = arith.constant 0 : i32
    return %arg0, %c0_i32, %c0_i32_0 : i32, i32, i32
  }
  func.func @transform_5(%arg0: i32) -> (i32, i32) {
    %c0_i32 = arith.constant 0 : i32
    %c0_i32_0 = arith.constant 0 : i32
    %c0_i32_1 = arith.constant 0 : i32
    return %c0_i32, %c0_i32_0 : i32, i32
  }
  func.func @transform_6(%arg0: i32) -> (i32, i32) {
    %c0_i32 = arith.constant 0 : i32
    %c0_i32_0 = arith.constant 0 : i32
    %c0_i32_1 = arith.constant 0 : i32
    return %c0_i32, %c0_i32_0 : i32, i32
  }
  func.func @transform_7(%arg0: i32) -> (i32, i32) {
    %c0_i32 = arith.constant 0 : i32
    %c0_i32_0 = arith.constant 0 : i32
    %c0_i32_1 = arith.constant 0 : i32
    return %c0_i32, %c0_i32_0 : i32, i32
  }
  func.func @transform_8(%arg0: i32) -> (i32, i32) {
    %c0_i32 = arith.constant 0 : i32
    %c0_i32_0 = arith.constant 0 : i32
    %c0_i32_1 = arith.constant 0 : i32
    return %c0_i32, %c0_i32_0 : i32, i32
  }
  func.func @transform_9(%arg0: i32) -> (i32, i32, i32) {
    %c0_i32 = arith.constant 0 : i32
    %c0_i32_0 = arith.constant 0 : i32
    %c0_i32_1 = arith.constant 0 : i32
    return %arg0, %c0_i32, %c0_i32_0 : i32, i32, i32
  }
  func.func @transform_10(%arg0: i32) -> (i32, i32, i32) {
    %c0_i32 = arith.constant 0 : i32
    %c0_i32_0 = arith.constant 0 : i32
    %c0_i32_1 = arith.constant 0 : i32
    return %arg0, %c0_i32, %c0_i32_0 : i32, i32, i32
  }
}

</mosaic_0001>

<llo_original>
// kernel: tpu_custom_call.1
$region0: #{tpu_custom_call.1}
  #allocation0 [shape = 'u32[]', space=smem, size = 0x4, offset = 0x4, fixed_abs, tag = 'smem constant byte address 0x4 - core index']
  #allocation1 [shape = 'u32[144,128]{1,0:T(1,128)}', space=vmem, size = 0x12000, scoped, tag = 'internal scratch']
  #allocation2 [shape = 'f32[1,1]{1,0:T(1,128)S(6)}', space=smem, size = 0x200, scoped, tag = 'scoped memory for tpu_custom_call.1']
  #allocation3 [shape = 'f32[1,1]{1,0:T(1,128)S(6)}', space=smem, size = 0x200, scoped, tag = 'scoped memory for tpu_custom_call.1']
  %s0 = inlined_call_operand.<no memory space> [shape: f32[1,1], index: 0, kind: input, shape index: {}]
  %s1 = inlined_call_operand.<no memory space> [shape: f32[1,1], index: 1, kind: input, shape index: {}]
  %s2 = inlined_call_operand.vmem [shape: f32[2,8,32], index: 2, kind: input, shape index: {}]
  %s3 = inlined_call_operand.vmem [shape: f32[2,8,4], index: 3, kind: input, shape index: {}]
  %s4 = inlined_call_operand.vmem [shape: f32[2,8,6], index: 4, kind: input, shape index: {}]
  %s5 = inlined_call_operand.vmem [shape: f32[4,32], index: 5, kind: input, shape index: {}]
  %s6 = inlined_call_operand.vmem [shape: f32[6,32], index: 6, kind: input, shape index: {}]
  %s7 = inlined_call_operand.vmem [shape: f32[1,32], index: 7, kind: input, shape index: {}]
  %s8 = inlined_call_operand.vmem [shape: f32[1,32], index: 8, kind: input, shape index: {}]
  %s9 = inlined_call_operand.vmem [shape: f32[2,8,1], index: 9, kind: input, shape index: {}]
  %s10 = inlined_call_operand.hbm [shape: f32[2,8,32], index: 10, kind: output, shape index: {}]
  %s11 = sld [smem:[#allocation0]]
  $region73: #{tpu_custom_call.1} parent=0
    _
  %s13 = ssub.s32 1, %s11
  %s14 = scalar_select 0, %s13, %s11
  %15 = sst [smem:[#allocation2]] %s0
  %16 = sst [smem:[#allocation3]] %s1
  $region1: #{tpu_custom_call.1} parent=0
    #allocation4 [shape = 'u8[8192]{0}', space=vmem, size = 0x2000, scoped, tag = 'output window, operand 0']
    #allocation5 [shape = 's32[2]{0}', space=sflag, size = 0x8, scoped, tag = 'scoped memory for tpu_custom_call.1']
    %17 = vsyncpa [#allocation5], 0
    %s18 = scalar_lea.sflag [#allocation5], 1
    %19 = vsyncpa %s18, 0
    loop: start=0, step=1, limit=4
    $region2: #{tpu_custom_call.1} parent=1 // loop_pre_header
      _
    $region3: #{tpu_custom_call.1} parent=1 // loop_header
      %s21 = sphi 0, %s25
      %p22 = scmp.ge.s32.totalorder %s21, 4
      %s29 = sphi 0, %s29
      %s31 = sphi 0, %s29
      %s32 = sphi 0, %s31
      %s46 = sphi 0, %s32
      %s50 = sphi 0, %s50
      %s52 = sphi 0, %s50
      %s53 = sphi 0, %s52
      %s67 = sphi 0, %s53
      %s73 = sphi 0, %s75
      %s76 = sphi 0, %s73
      %s77 = sphi 0, %s76
      %s93 = sphi 0, %s77
      %s99 = sphi 0, %s101
      %s102 = sphi 0, %s99
      %s103 = sphi 0, %s102
      %s119 = sphi 0, %s103
      %s125 = sphi 0, %s127
      %s128 = sphi 0, %s125
      %s129 = sphi 0, %s128
      %s145 = sphi 0, %s129
      %s149 = sphi 0, %s149
      %s151 = sphi 0, %s149
      %s152 = sphi 0, %s151
      %s166 = sphi 0, %s152
      %s170 = sphi 0, %s170
      %s172 = sphi 0, %s170
      %s173 = sphi 0, %s172
      %s187 = sphi 0, %s173
      %s191 = sphi 0, %s191
      %s193 = sphi 0, %s191
      %s194 = sphi 0, %s193
      %s208 = sphi 0, %s194
      %s212 = sphi 0, %s212
      %s214 = sphi 0, %s212
      %s215 = sphi 0, %s214
      %s229 = sphi 0, %s215
      %s235 = sphi 0, %s237
      %s238 = sphi 0, %s235
      %s239 = sphi 0, %s238
      %s255 = sphi 0, %s239
      %s261 = sphi 0, %s263
      %s264 = sphi 0, %s261
      %s265 = sphi 0, %s264
      %s281 = sphi 0, %s265
    $region4: #{tpu_custom_call.1} parent=1 // loop_header_branch
      %24 = sbr.rel (%p22) target = $region8
    $region5: #{tpu_custom_call.1} parent=1 // loop_body
      %s26 = ssub.s32 %s21, 1
      %s27 = ssub.s32 %s21, 2
      %s28 = sadd.s32 %s21, 1
      %s30 = sadd.s32 %s29, 1
      %p33 = scmp.eq.s32.totalorder %s21, 1
      %p34 = scmp.ne.s32.totalorder %s29, %s31
      %p35 = scmp.eq.s32.totalorder %s21, 0
      %p36 = por %p34, %p35
      %p37 = scmp.ne.s32.totalorder %s29, %s31
      %p38 = scmp.eq.s32.totalorder %s26, 1
      %p39 = por %p37, %p38
      %p40 = scmp.ne.s32.totalorder %s31, %s32
      %p41 = scmp.eq.s32.totalorder %s26, 0
      %p42 = por %p40, %p41
      %p43 = scmp.ne.s32.totalorder %s31, %s32
      %p44 = scmp.eq.s32.totalorder %s27, 1
      %p45 = por %p43, %p44
      %p47 = scmp.ne.s32.totalorder %s32, %s46
      %p48 = scmp.eq.s32.totalorder %s27, 0
      %p49 = por %p47, %p48
      %s51 = sadd.s32 %s50, 1
      %p54 = scmp.eq.s32.totalorder %s21, 1
      %p55 = scmp.ne.s32.totalorder %s50, %s52
      %p56 = scmp.eq.s32.totalorder %s21, 0
      %p57 = por %p55, %p56
      %p58 = scmp.ne.s32.totalorder %s50, %s52
      %p59 = scmp.eq.s32.totalorder %s26, 1
      %p60 = por %p58, %p59
      %p61 = scmp.ne.s32.totalorder %s52, %s53
      %p62 = scmp.eq.s32.totalorder %s26, 0
      %p63 = por %p61, %p62
      %p64 = scmp.ne.s32.totalorder %s52, %s53
      %p65 = scmp.eq.s32.totalorder %s27, 1
      %p66 = por %p64, %p65
      %p68 = scmp.ne.s32.totalorder %s53, %s67
      %p69 = scmp.eq.s32.totalorder %s27, 0
      %p70 = por %p68, %p69
      %s71 = ssub.s32 %s21, %s28
      %p72 = scmp.eq.s32.totalorder %s71, 0
      %s74 = sadd.s32 %s73, 1
      %s75 = scalar_select %p72, %s73, %s74
      %p78 = pneg %p72
      %p79 = scmp.eq.s32.totalorder %s21, 1
      %p80 = por %p78, %p79
      %p81 = scmp.ne.s32.totalorder %s73, %s76
      %p82 = scmp.eq.s32.totalorder %s21, 0
      %p83 = por %p81, %p82
      %p84 = scmp.ne.s32.totalorder %s73, %s76
      %p85 = scmp.eq.s32.totalorder %s26, 1
      %p86 = por %p84, %p85
      %p87 = scmp.ne.s32.totalorder %s76, %s77
      %p88 = scmp.eq.s32.totalorder %s26, 0
      %p89 = por %p87, %p88
      %p90 = scmp.ne.s32.totalorder %s76, %s77
      %p91 = scmp.eq.s32.totalorder %s27, 1
      %p92 = por %p90, %p91
      %p94 = scmp.ne.s32.totalorder %s77, %s93
      %p95 = scmp.eq.s32.totalorder %s27, 0
      %p96 = por %p94, %p95
      %s97 = ssub.s32 %s21, %s28
      %p98 = scmp.eq.s32.totalorder %s97, 0
      %s100 = sadd.s32 %s99, 1
      %s101 = scalar_select %p98, %s99, %s100
      %p104 = pneg %p98
      %p105 = scmp.eq.s32.totalorder %s21, 1
      %p106 = por %p104, %p105
      %p107 = scmp.ne.s32.totalorder %s99, %s102
      %p108 = scmp.eq.s32.totalorder %s21, 0
      %p109 = por %p107, %p108
      %p110 = scmp.ne.s32.totalorder %s99, %s102
      %p111 = scmp.eq.s32.totalorder %s26, 1
      %p112 = por %p110, %p111
      %p113 = scmp.ne.s32.totalorder %s102, %s103
      %p114 = scmp.eq.s32.totalorder %s26, 0
      %p115 = por %p113, %p114
      %p116 = scmp.ne.s32.totalorder %s102, %s103
      %p117 = scmp.eq.s32.totalorder %s27, 1
      %p118 = por %p116, %p117
      %p120 = scmp.ne.s32.totalorder %s103, %s119
      %p121 = scmp.eq.s32.totalorder %s27, 0
      %p122 = por %p120, %p121
      %s123 = ssub.s32 %s21, %s28
      %p124 = scmp.eq.s32.totalorder %s123, 0
      %s126 = sadd.s32 %s125, 1
      %s127 = scalar_select %p124, %s125, %s126
      %p130 = pneg %p124
      %p131 = scmp.eq.s32.totalorder %s21, 1
      %p132 = por %p130, %p131
      %p133 = scmp.ne.s32.totalorder %s125, %s128
      %p134 = scmp.eq.s32.totalorder %s21, 0
      %p135 = por %p133, %p134
      %p136 = scmp.ne.s32.totalorder %s125, %s128
      %p137 = scmp.eq.s32.totalorder %s26, 1
      %p138 = por %p136, %p137
      %p139 = scmp.ne.s32.totalorder %s128, %s129
      %p140 = scmp.eq.s32.totalorder %s26, 0
      %p141 = por %p139, %p140
      %p142 = scmp.ne.s32.totalorder %s128, %s129
      %p143 = scmp.eq.s32.totalorder %s27, 1
      %p144 = por %p142, %p143
      %p146 = scmp.ne.s32.totalorder %s129, %s145
      %p147 = scmp.eq.s32.totalorder %s27, 0
      %p148 = por %p146, %p147
      %s150 = sadd.s32 %s149, 1
      %p153 = scmp.eq.s32.totalorder %s21, 1
      %p154 = scmp.ne.s32.totalorder %s149, %s151
      %p155 = scmp.eq.s32.totalorder %s21, 0
      %p156 = por %p154, %p155
      %p157 = scmp.ne.s32.totalorder %s149, %s151
      %p158 = scmp.eq.s32.totalorder %s26, 1
      %p159 = por %p157, %p158
      %p160 = scmp.ne.s32.totalorder %s151, %s152
      %p161 = scmp.eq.s32.totalorder %s26, 0
      %p162 = por %p160, %p161
      %p163 = scmp.ne.s32.totalorder %s151, %s152
      %p164 = scmp.eq.s32.totalorder %s27, 1
      %p165 = por %p163, %p164
      %p167 = scmp.ne.s32.totalorder %s152, %s166
      %p168 = scmp.eq.s32.totalorder %s27, 0
      %p169 = por %p167, %p168
      %s171 = sadd.s32 %s170, 1
      %p174 = scmp.eq.s32.totalorder %s21, 1
      %p175 = scmp.ne.s32.totalorder %s170, %s172
      %p176 = scmp.eq.s32.totalorder %s21, 0
      %p177 = por %p175, %p176
      %p178 = scmp.ne.s32.totalorder %s170, %s172
      %p179 = scmp.eq.s32.totalorder %s26, 1
      %p180 = por %p178, %p179
      %p181 = scmp.ne.s32.totalorder %s172, %s173
      %p182 = scmp.eq.s32.totalorder %s26, 0
      %p183 = por %p181, %p182
      %p184 = scmp.ne.s32.totalorder %s172, %s173
      %p185 = scmp.eq.s32.totalorder %s27, 1
      %p186 = por %p184, %p185
      %p188 = scmp.ne.s32.totalorder %s173, %s187
      %p189 = scmp.eq.s32.totalorder %s27, 0
      %p190 = por %p188, %p189
      %s192 = sadd.s32 %s191, 1
      %p195 = scmp.eq.s32.totalorder %s21, 1
      %p196 = scmp.ne.s32.totalorder %s191, %s193
      %p197 = scmp.eq.s32.totalorder %s21, 0
      %p198 = por %p196, %p197
      %p199 = scmp.ne.s32.totalorder %s191, %s193
      %p200 = scmp.eq.s32.totalorder %s26, 1
      %p201 = por %p199, %p200
      %p202 = scmp.ne.s32.totalorder %s193, %s194
      %p203 = scmp.eq.s32.totalorder %s26, 0
      %p204 = por %p202, %p203
      %p205 = scmp.ne.s32.totalorder %s193, %s194
      %p206 = scmp.eq.s32.totalorder %s27, 1
      %p207 = por %p205, %p206
      %p209 = scmp.ne.s32.totalorder %s194, %s208
      %p210 = scmp.eq.s32.totalorder %s27, 0
      %p211 = por %p209, %p210
      %s213 = sadd.s32 %s212, 1
      %p216 = scmp.eq.s32.totalorder %s21, 1
      %p217 = scmp.ne.s32.totalorder %s212, %s214
      %p218 = scmp.eq.s32.totalorder %s21, 0
      %p219 = por %p217, %p218
      %p220 = scmp.ne.s32.totalorder %s212, %s214
      %p221 = scmp.eq.s32.totalorder %s26, 1
      %p222 = por %p220, %p221
      %p223 = scmp.ne.s32.totalorder %s214, %s215
      %p224 = scmp.eq.s32.totalorder %s26, 0
      %p225 = por %p223, %p224
      %p226 = scmp.ne.s32.totalorder %s214, %s215
      %p227 = scmp.eq.s32.totalorder %s27, 1
      %p228 = por %p226, %p227
      %p230 = scmp.ne.s32.totalorder %s215, %s229
      %p231 = scmp.eq.s32.totalorder %s27, 0
      %p232 = por %p230, %p231
      %s233 = ssub.s32 %s21, %s28
      %p234 = scmp.eq.s32.totalorder %s233, 0
      %s236 = sadd.s32 %s235, 1
      %s237 = scalar_select %p234, %s235, %s236
      %p240 = pneg %p234
      %p241 = scmp.eq.s32.totalorder %s21, 1
      %p242 = por %p240, %p241
      %p243 = scmp.ne.s32.totalorder %s235, %s238
      %p244 = scmp.eq.s32.totalorder %s21, 0
      %p245 = por %p243, %p244
      %p246 = scmp.ne.s32.totalorder %s235, %s238
      %p247 = scmp.eq.s32.totalorder %s26, 1
      %p248 = por %p246, %p247
      %p249 = scmp.ne.s32.totalorder %s238, %s239
      %p250 = scmp.eq.s32.totalorder %s26, 0
      %p251 = por %p249, %p250
      %p252 = scmp.ne.s32.totalorder %s238, %s239
      %p253 = scmp.eq.s32.totalorder %s27, 1
      %p254 = por %p252, %p253
      %p256 = scmp.ne.s32.totalorder %s239, %s255
      %p257 = scmp.eq.s32.totalorder %s27, 0
      %p258 = por %p256, %p257
      %s259 = ssub.s32 %s21, %s28
      %p260 = scmp.eq.s32.totalorder %s259, 0
      %s262 = sadd.s32 %s261, 1
      %s263 = scalar_select %p260, %s261, %s262
      %p266 = pneg %p260
      %p267 = scmp.eq.s32.totalorder %s21, 1
      %p268 = por %p266, %p267
      %p269 = scmp.ne.s32.totalorder %s261, %s264
      %p270 = scmp.eq.s32.totalorder %s21, 0
      %p271 = por %p269, %p270
      %p272 = scmp.ne.s32.totalorder %s261, %s264
      %p273 = scmp.eq.s32.totalorder %s26, 1
      %p274 = por %p272, %p273
      %p275 = scmp.ne.s32.totalorder %s264, %s265
      %p276 = scmp.eq.s32.totalorder %s26, 0
      %p277 = por %p275, %p276
      %p278 = scmp.ne.s32.totalorder %s264, %s265
      %p279 = scmp.eq.s32.totalorder %s27, 1
      %p280 = por %p278, %p279
      %p282 = scmp.ne.s32.totalorder %s265, %s281
      %p283 = scmp.eq.s32.totalorder %s27, 0
      %p284 = por %p282, %p283
      %p285 = scmp.le.s32.totalorder 1, %s21
      %p286 = scmp.lt.s32.totalorder %s21, 3
      %p287 = pnand %p285, %p286
      %p288 = pneg %p287
      // Predicated region
      $region9: #{tpu_custom_call.1} parent=5 // pred_check
        _
      $region10: #{tpu_custom_call.1} parent=5 // pred_check_branch
        %290 = sbr.rel (%p287) target = $region12
      $region11: #{tpu_custom_call.1} parent=5 // pred_region
        %s291 = ssub.s32 %s21, 1
        // Predicated region
        $region13: #{tpu_custom_call.1} parent=11 // pred_check
          %p292 = pneg %p42
        $region14: #{tpu_custom_call.1} parent=11 // pred_check_branch
          %294 = sbr.rel (%p292) target = $region16
        $region15: #{tpu_custom_call.1} parent=11 // pred_region
          _
        $region16: #{tpu_custom_call.1} parent=11 // pred_fallthru
          _
        // Predicated region
        $region17: #{tpu_custom_call.1} parent=11 // pred_check
          %p295 = pneg %p63
        $region18: #{tpu_custom_call.1} parent=11 // pred_check_branch
          %297 = sbr.rel (%p295) target = $region20
        $region19: #{tpu_custom_call.1} parent=11 // pred_region
          _
        $region20: #{tpu_custom_call.1} parent=11 // pred_fallthru
          _
        // Predicated region
        $region21: #{tpu_custom_call.1} parent=11 // pred_check
          %p298 = pneg %p162
        $region22: #{tpu_custom_call.1} parent=11 // pred_check_branch
          %300 = sbr.rel (%p298) target = $region24
        $region23: #{tpu_custom_call.1} parent=11 // pred_region
          _
        $region24: #{tpu_custom_call.1} parent=11 // pred_fallthru
          _
        // Predicated region
        $region25: #{tpu_custom_call.1} parent=11 // pred_check
          %p301 = pneg %p183
        $region26: #{tpu_custom_call.1} parent=11 // pred_check_branch
          %303 = sbr.rel (%p301) target = $region28
        $region27: #{tpu_custom_call.1} parent=11 // pred_region
          _
        $region28: #{tpu_custom_call.1} parent=11 // pred_fallthru
          _
        // Predicated region
        $region29: #{tpu_custom_call.1} parent=11 // pred_check
          %p304 = pneg %p204
        $region30: #{tpu_custom_call.1} parent=11 // pred_check_branch
          %306 = sbr.rel (%p304) target = $region32
        $region31: #{tpu_custom_call.1} parent=11 // pred_region
          _
        $region32: #{tpu_custom_call.1} parent=11 // pred_fallthru
          _
        // Predicated region
        $region33: #{tpu_custom_call.1} parent=11 // pred_check
          %p307 = pneg %p225
        $region34: #{tpu_custom_call.1} parent=11 // pred_check_branch
          %309 = sbr.rel (%p307) target = $region36
        $region35: #{tpu_custom_call.1} parent=11 // pred_region
          _
        $region36: #{tpu_custom_call.1} parent=11 // pred_fallthru
          _
      $region12: #{tpu_custom_call.1} parent=5 // pred_fallthru
        _
      %p310 = scmp.lt.s32.totalorder %s21, 2
      // Predicated region
      $region37: #{tpu_custom_call.1} parent=5 // pred_check
        %p311 = pneg %p310
      $region38: #{tpu_custom_call.1} parent=5 // pred_check_branch
        %313 = sbr.rel (%p311) target = $region40
      $region39: #{tpu_custom_call.1} parent=5 // pred_region
        // Predicated region
        $region41: #{tpu_custom_call.1} parent=39 // pred_check
          %p314 = pneg %p83
        $region42: #{tpu_custom_call.1} parent=39 // pred_check_branch
          %316 = sbr.rel (%p314) target = $region44
        $region43: #{tpu_custom_call.1} parent=39 // pred_region
          %p317 = scmp.lt.s32.totalorder %s21, 1
          %s318 = scalar_select %p317, %s21, 1
          %s319 = smul.addr %s318, 8
          %s320 = scalar_lea.vmem %s2, %s319
        $region44: #{tpu_custom_call.1} parent=39 // pred_fallthru
          _
        // Predicated region
        $region45: #{tpu_custom_call.1} parent=39 // pred_check
          %p321 = pneg %p109
        $region46: #{tpu_custom_call.1} parent=39 // pred_check_branch
          %323 = sbr.rel (%p321) target = $region48
        $region47: #{tpu_custom_call.1} parent=39 // pred_region
          %p324 = scmp.lt.s32.totalorder %s21, 1
          %s325 = scalar_select %p324, %s21, 1
          %s326 = smul.addr %s325, 8
          %s327 = scalar_lea.vmem %s3, %s326
        $region48: #{tpu_custom_call.1} parent=39 // pred_fallthru
          _
        // Predicated region
        $region49: #{tpu_custom_call.1} parent=39 // pred_check
          %p328 = pneg %p135
        $region50: #{tpu_custom_call.1} parent=39 // pred_check_branch
          %330 = sbr.rel (%p328) target = $region52
        $region51: #{tpu_custom_call.1} parent=39 // pred_region
          %p331 = scmp.lt.s32.totalorder %s21, 1
          %s332 = scalar_select %p331, %s21, 1
          %s333 = smul.addr %s332, 8
          %s334 = scalar_lea.vmem %s4, %s333
        $region52: #{tpu_custom_call.1} parent=39 // pred_fallthru
          _
        // Predicated region
        $region53: #{tpu_custom_call.1} parent=39 // pred_check
          %p335 = pneg %p245
        $region54: #{tpu_custom_call.1} parent=39 // pred_check_branch
          %337 = sbr.rel (%p335) target = $region56
        $region55: #{tpu_custom_call.1} parent=39 // pred_region
          %p338 = scmp.lt.s32.totalorder %s21, 1
          %s339 = scalar_select %p338, %s21, 1
          %s340 = smul.addr %s339, 8
          %s341 = scalar_lea.vmem %s9, %s340
        $region56: #{tpu_custom_call.1} parent=39 // pred_fallthru
          _
      $region40: #{tpu_custom_call.1} parent=5 // pred_fallthru
        _
      %p342 = scmp.le.s32.totalorder 1, %s21
      %p343 = scmp.lt.s32.totalorder %s21, 3
      %p344 = pnand %p342, %p343
      %p345 = pneg %p344
      // Predicated region
      $region57: #{tpu_custom_call.1} parent=5 // pred_check
        _
      $region58: #{tpu_custom_call.1} parent=5 // pred_check_branch
        %347 = sbr.rel (%p344) target = $region60
      $region59: #{tpu_custom_call.1} parent=5 // pred_region
        %s348 = ssub.s32 %s21, 1
        %p349 = pneg %p42
        %p350 = pneg %p39
        %p351 = pneg %p63
        %p352 = pneg %p60
        %p353 = scmp.lt.s32.totalorder %s26, 1
        %s354 = scalar_select %p353, %s26, 1
        %s355 = smul.addr %s354, 8
        %s356 = scalar_lea.vmem %s2, %s355
        %p357 = pneg %p89
        %p358 = pneg %p86
        %p359 = scmp.lt.s32.totalorder %s26, 1
        %s360 = scalar_select %p359, %s26, 1
        %s361 = smul.addr %s360, 8
        %s362 = scalar_lea.vmem %s3, %s361
        %p363 = pneg %p115
        %p364 = pneg %p112
        %p365 = scmp.lt.s32.totalorder %s26, 1
        %s366 = scalar_select %p365, %s26, 1
        %s367 = smul.addr %s366, 8
        %s368 = scalar_lea.vmem %s4, %s367
        %p369 = pneg %p141
        %p370 = pneg %p138
        %p371 = pneg %p162
        %p372 = pneg %p159
        %p373 = pneg %p183
        %p374 = pneg %p180
        %p375 = pneg %p204
        %p376 = pneg %p201
        %p377 = pneg %p225
        %p378 = pneg %p222
        %p379 = scmp.lt.s32.totalorder %s26, 1
        %s380 = scalar_select %p379, %s26, 1
        %s381 = smul.addr %s380, 8
        %s382 = scalar_lea.vmem %s9, %s381
        %p383 = pneg %p251
        %p384 = pneg %p248
        %p385 = pneg %p277
        %p386 = pneg %p274
        %s387 = sand.u32 %s264, 1
        %s388 = scalar_lea.sflag [#allocation5], %s387
        %s389 = sand.u32 %s264, 1
        %s390 = smul.addr %s389, 8
        %s391 = scalar_lea.vmem [#allocation4], %s390
        %p392 = scmp.lt.s32.totalorder %s26, 1
        %s393 = scalar_select %p392, %s26, 1
        %s394 = smul.addr %s393, 8
        %s395 = scalar_lea.vmem %s2, %s394
        %p396 = scmp.lt.s32.totalorder %s26, 1
        %s397 = scalar_select %p396, %s26, 1
        %s398 = smul.addr %s397, 8
        %s399 = scalar_lea.vmem %s3, %s398
        %p400 = scmp.lt.s32.totalorder %s26, 1
        %s401 = scalar_select %p400, %s26, 1
        %s402 = smul.addr %s401, 8
        %s403 = scalar_lea.vmem %s4, %s402
        %p404 = scmp.lt.s32.totalorder %s26, 1
        %s405 = scalar_select %p404, %s26, 1
        %s406 = smul.addr %s405, 8
        %s407 = scalar_lea.vmem %s9, %s406
        %v408 = vld [vmem:[%s395] sm:$0xff]
        %s409 = sld [smem:[#allocation2]]
        %v410 = vstv %s409
        %v411 = vrcp.pop %v410
        %s412 = vtos %v411
        %s413 = sld [smem:[#allocation3]]
        %v414 = vstv %s413
        %v415 = vrcp.pop %v414
        %s416 = vtos %v415
        %v417 = vld [vmem:[%s399] sm:$0xff]
        %v418 = vstv %s412
        %v419 = vmul.f32 %v417, %v418
        %vm420 = vcmask 31744
        %v421 = vsel %vm420, %v419, -inf
        %422 = vmax.xlane.f32.xlu0 %v421
        %v423 = vpop.xlane.xlu0 %422
        %v424 = vsub.f32 %v419, %v423
        %v425 = vmul.f32 %v424, 1.442695
        %v426 = vpow.pop %v425
        %v427 = vsel %vm420, %v426, 0.0
        %428 = vadd.xlane.f32.xlu0 %v427
        %v429 = vpop.xlane.xlu0 %428
        %v430 = vrcp.pop %v429
        %v431 = vmul.f32 %v426, %v430
        %v432 = vld [vmem:[%s5] sm:$0xf]
        %v434 = vsel %vm420, %v431, 0
        %vm436 = vcmask 1043456
        %v438 = vsel %vm436, %v432, 0
        %440 = vmatprep.subr.mxu0 0.0
        %441 = vmatpush1.msra.mxu0 0.0
        %442 = vmatprep.subr.mxu0 0.0
        %443 = vmatpush1.msra.mxu0 0.0
        %444 = vmatprep.subr.mxu0 0.0
        %445 = vmatpush1.msra.mxu0 0.0
        %446 = vmatprep.subr.mxu0 0.0
        %447 = vmatpush1.msra.mxu0 0.0
        %448 = vmatprep.subr.mxu0 0.0
        %449 = vmatpush1.msra.mxu0 0.0
        %450 = vmatprep.subr.mxu0 0.0
        %451 = vmatpush1.msra.mxu0 0.0
        %452 = vmatprep.subr.mxu0 0.0
        %453 = vmatpush1.msra.mxu0 0.0
        %454 = vmatprep.subr.mxu0 0.0
        %455 = vmatpush1.msra.mxu0 0.0
        %456 = vmatprep.subr.mxu0 0.0
        %457 = vmatpush1.msra.mxu0 0.0
        %458 = vmatprep.subr.mxu0 0.0
        %459 = vmatpush1.msra.mxu0 0.0
        %460 = vmatprep.subr.mxu0 0.0
        %461 = vmatpush1.msra.mxu0 0.0
        %462 = vmatprep.subr.mxu0 0.0
        %463 = vmatpush1.msra.mxu0 0.0
        %464 = vmatprep.subr.mxu0 0.0
        %465 = vmatpush1.msra.mxu0 0.0
        %466 = vmatprep.subr.mxu0 0.0
        %467 = vmatpush1.msra.mxu0 0.0
        %468 = vmatprep.subr.mxu0 0.0
        %469 = vmatpush1.msra.mxu0 0.0
        %470 = vmatprep.subr.mxu0 0.0
        %471 = vmatpush1.msra.mxu0 %v438
        %472 = vmatprep.subr.mxu0 0.0
        %473 = vmatpush2.msra.mxu0 0.0
        %474 = vmatprep.subr.mxu0 0.0
        %475 = vmatpush2.msra.mxu0 0.0
        %476 = vmatprep.subr.mxu0 0.0
        %477 = vmatpush2.msra.mxu0 0.0
        %478 = vmatprep.subr.mxu0 0.0
        %479 = vmatpush2.msra.mxu0 0.0
        %480 = vmatprep.subr.mxu0 0.0
        %481 = vmatpush2.msra.mxu0 0.0
        %482 = vmatprep.subr.mxu0 0.0
        %483 = vmatpush2.msra.mxu0 0.0
        %484 = vmatprep.subr.mxu0 0.0
        %485 = vmatpush2.msra.mxu0 0.0
        %486 = vmatprep.subr.mxu0 0.0
        %487 = vmatpush2.msra.mxu0 0.0
        %488 = vmatprep.subr.mxu0 0.0
        %489 = vmatpush2.msra.mxu0 0.0
        %490 = vmatprep.subr.mxu0 0.0
        %491 = vmatpush2.msra.mxu0 0.0
        %492 = vmatprep.subr.mxu0 0.0
        %493 = vmatpush2.msra.mxu0 0.0
        %494 = vmatprep.subr.mxu0 0.0
        %495 = vmatpush2.msra.mxu0 0.0
        %496 = vmatprep.subr.mxu0 0.0
        %497 = vmatpush2.msra.mxu0 0.0
        %498 = vmatprep.subr.mxu0 0.0
        %499 = vmatpush2.msra.mxu0 0.0
        %500 = vmatprep.subr.mxu0 0.0
        %501 = vmatpush2.msra.mxu0 0.0
        %502 = vmatprep.subr.mxu0 0.0
        %503 = vmatpush2.msra.mxu0 0.0
        %504 = vmatprep.mubr.f32.mxu0 0.0
        %505 = vmatmul.mubr.f32.gmra.mxu0 %v434
        %v506 = vpop.f32.mrf.mxu0
        %v507 = vadd.f32 0.0, %v506
        %v508 = vpop.f32.mrf.mxu0
        %509 = vdwg.mxu0
        %v510 = vld [vmem:[%s403] sm:$0xff]
        %v511 = vstv %s416
        %v512 = vmul.f32 %v510, %v511
        %vm513 = vcmask 48128
        %v514 = vsel %vm513, %v512, -inf
        %515 = vmax.xlane.f32.xlu0 %v514
        %v516 = vpop.xlane.xlu0 %515
        %v517 = vsub.f32 %v512, %v516
        %v518 = vmul.f32 %v517, 1.442695
        %v519 = vpow.pop %v518
        %v520 = vsel %vm513, %v519, 0.0
        %521 = vadd.xlane.f32.xlu0 %v520
        %v522 = vpop.xlane.xlu0 %521
        %v523 = vrcp.pop %v522
        %v524 = vmul.f32 %v519, %v523
        %v525 = vld [vmem:[%s6] sm:$0x3f]
        %v527 = vsel %vm513, %v524, 0
        %vm529 = vcmask 1045504
        %v531 = vsel %vm529, %v525, 0
        %533 = vmatprep.subr.mxu0 0.0
        %534 = vmatpush1.msra.mxu0 0.0
        %535 = vmatprep.subr.mxu0 0.0
        %536 = vmatpush1.msra.mxu0 0.0
        %537 = vmatprep.subr.mxu0 0.0
        %538 = vmatpush1.msra.mxu0 0.0
        %539 = vmatprep.subr.mxu0 0.0
        %540 = vmatpush1.msra.mxu0 0.0
        %541 = vmatprep.subr.mxu0 0.0
        %542 = vmatpush1.msra.mxu0 0.0
        %543 = vmatprep.subr.mxu0 0.0
        %544 = vmatpush1.msra.mxu0 0.0
        %545 = vmatprep.subr.mxu0 0.0
        %546 = vmatpush1.msra.mxu0 0.0
        %547 = vmatprep.subr.mxu0 0.0
        %548 = vmatpush1.msra.mxu0 0.0
        %549 = vmatprep.subr.mxu0 0.0
        %550 = vmatpush1.msra.mxu0 0.0
        %551 = vmatprep.subr.mxu0 0.0
        %552 = vmatpush1.msra.mxu0 0.0
        %553 = vmatprep.subr.mxu0 0.0
        %554 = vmatpush1.msra.mxu0 0.0
        %555 = vmatprep.subr.mxu0 0.0
        %556 = vmatpush1.msra.mxu0 0.0
        %557 = vmatprep.subr.mxu0 0.0
        %558 = vmatpush1.msra.mxu0 0.0
        %559 = vmatprep.subr.mxu0 0.0
        %560 = vmatpush1.msra.mxu0 0.0
        %561 = vmatprep.subr.mxu0 0.0
        %562 = vmatpush1.msra.mxu0 0.0
        %563 = vmatprep.subr.mxu0 0.0
        %564 = vmatpush1.msra.mxu0 %v531
        %565 = vmatprep.subr.mxu0 0.0
        %566 = vmatpush2.msra.mxu0 0.0
        %567 = vmatprep.subr.mxu0 0.0
        %568 = vmatpush2.msra.mxu0 0.0
        %569 = vmatprep.subr.mxu0 0.0
        %570 = vmatpush2.msra.mxu0 0.0
        %571 = vmatprep.subr.mxu0 0.0
        %572 = vmatpush2.msra.mxu0 0.0
        %573 = vmatprep.subr.mxu0 0.0
        %574 = vmatpush2.msra.mxu0 0.0
        %575 = vmatprep.subr.mxu0 0.0
        %576 = vmatpush2.msra.mxu0 0.0
        %577 = vmatprep.subr.mxu0 0.0
        %578 = vmatpush2.msra.mxu0 0.0
        %579 = vmatprep.subr.mxu0 0.0
        %580 = vmatpush2.msra.mxu0 0.0
        %581 = vmatprep.subr.mxu0 0.0
        %582 = vmatpush2.msra.mxu0 0.0
        %583 = vmatprep.subr.mxu0 0.0
        %584 = vmatpush2.msra.mxu0 0.0
        %585 = vmatprep.subr.mxu0 0.0
        %586 = vmatpush2.msra.mxu0 0.0
        %587 = vmatprep.subr.mxu0 0.0
        %588 = vmatpush2.msra.mxu0 0.0
        %589 = vmatprep.subr.mxu0 0.0
        %590 = vmatpush2.msra.mxu0 0.0
        %591 = vmatprep.subr.mxu0 0.0
        %592 = vmatpush2.msra.mxu0 0.0
        %593 = vmatprep.subr.mxu0 0.0
        %594 = vmatpush2.msra.mxu0 0.0
        %595 = vmatprep.subr.mxu0 0.0
        %596 = vmatpush2.msra.mxu0 0.0
        %597 = vmatprep.mubr.f32.mxu0 0.0
        %598 = vmatmul.mubr.f32.gmra.mxu0 %v527
        %v599 = vpop.f32.mrf.mxu0
        %v600 = vadd.f32 0.0, %v599
        %v601 = vpop.f32.mrf.mxu0
        %602 = vdwg.mxu0
        %v603 = vld [vmem:[%s7] sm:$0x1]
        %v605 = vlaneseq
        %v606 = vshrl.u32 %v605, 7
        %v607 = vsub.s32 0, %v606
        %v608 = vrot.slane %v603, %v607
        %v610 = vadd.f32 %v408, %v608
        %v611 = vadd.f32 %v610, %v507
        %v612 = vld [vmem:[%s8] sm:$0x1]
        %v614 = vlaneseq
        %v615 = vshrl.u32 %v614, 7
        %v616 = vsub.s32 0, %v615
        %v617 = vrot.slane %v612, %v616
        %v619 = vadd.f32 %v611, %v617
        %v620 = vadd.f32 %v619, %v600
        %v621 = vld [vmem:[%s407] sm:$0xff]
        %623 = vset.pattern.permute.xlu0 0
        %624 = vperm.xlu0 %623, %v621
        %v625 = vpop.permute.xlu0 %624
        %v627 = vmul.f32 %v620, %v625
        %vm628 = vcmask 261120
        %629 = vst.msk [vmem:[%s391] sm:$0xff] %vm628, %v627
        %s630 = sand.u32 %s264, 1
        %s631 = scalar_lea.sflag [#allocation5], %s630
        %s632 = sand.u32 %s264, 1
        %s633 = smul.addr %s632, 8
        %s634 = scalar_lea.vmem [#allocation4], %s633
        // Predicated region
        $region61: #{tpu_custom_call.1} parent=59 // pred_check
          %p635 = pneg %p274
        $region62: #{tpu_custom_call.1} parent=59 // pred_check_branch
          %637 = sbr.rel (%p635) target = $region64
        $region63: #{tpu_custom_call.1} parent=59 // pred_region
          %s639 = ssub.s32 128, 128
          %640 = vsyncadd %s631, %s639
          %s641 = smul.addr %s26, 128
          %s642 = scalar_lea.hbm %s10, %s641
          %s644 = sshll.u32 %s634, 4
          %s645 = int_to_ptr.vmem [resolvable:$true] %s644
          %647 = dma.vmem_to_hbm [thread:$0]  %s645, 128, %s642, %s631
        $region64: #{tpu_custom_call.1} parent=59 // pred_fallthru
          _
      $region60: #{tpu_custom_call.1} parent=5 // pred_fallthru
        _
      %p648 = scmp.le.s32.totalorder 2, %s21
      // Predicated region
      $region65: #{tpu_custom_call.1} parent=5 // pred_check
        %p649 = pneg %p648
      $region66: #{tpu_custom_call.1} parent=5 // pred_check_branch
        %651 = sbr.rel (%p649) target = $region68
      $region67: #{tpu_custom_call.1} parent=5 // pred_region
        %s652 = ssub.s32 %s21, 2
        // Predicated region
        $region69: #{tpu_custom_call.1} parent=67 // pred_check
          %p653 = pneg %p280
        $region70: #{tpu_custom_call.1} parent=67 // pred_check_branch
          %655 = sbr.rel (%p653) target = $region72
        $region71: #{tpu_custom_call.1} parent=67 // pred_region
          %s656 = sand.u32 %s265, 1
          %s657 = scalar_lea.sflag [#allocation5], %s656
          %s658 = sand.u32 %s265, 1
          %s659 = smul.addr %s658, 8
          %s660 = scalar_lea.vmem [#allocation4], %s659
          %661 = dma.done %s657, 128
        $region72: #{tpu_custom_call.1} parent=67 // pred_fallthru
          _
      $region68: #{tpu_custom_call.1} parent=5 // pred_fallthru
        _
    $region6: #{tpu_custom_call.1} parent=1 // loop_footer
      %s25 = sadd.s32 1, %s21
    $region7: #{tpu_custom_call.1} parent=1 // loop_footer_branch
      %20 = sbr.rel target = $region3
    $region8: #{tpu_custom_call.1} parent=1 // loop_exit
      _
    %662 = vsyncpa [#allocation5], 1
    %s663 = scalar_lea.sflag [#allocation5], 1
    %664 = vsyncpa %s663, 1

</llo_original>
